<compile_context>
chip_gen: v7x
topology: tpu7x:2x2x1
jax: 0.10.0
libtpu: 0.0.40
codegen_flags: <defaults>
</compile_context>

<pallas_src>
import functools

import jax
import jax.numpy as jnp
from jax.experimental import pallas as pl
from jax.experimental.pallas import tpu as pltpu

_LANES = 128
_MIN_BLOCK_BYTES = 4 * 1024 * 1024  # keep blocks >= ~4 MiB when splitting the grid


# ---------------------------------------------------------------------------
# Kernels
# ---------------------------------------------------------------------------

def _rms_norm_kernel(x_ref, o_ref, *, eps, native_scale):
    """General path: normalize each row of a (tile_rows, hidden) block."""
    # f32 reduction for a stable mean/rsqrt; the squared f32 tile is transient, so
    # no full-tile f32 copy is kept live across the rsqrt.
    ms = jnp.mean(jnp.square(x_ref[...].astype(jnp.float32)),
                  axis=-1, keepdims=True)
    inv = jax.lax.rsqrt(ms + eps)  # EUP slot, off the VALU critical path
    if native_scale:
        # bf16-VALU chips (v6e/v7x): scale straight in the input dtype.
        o_ref[...] = x_ref[...] * inv.astype(o_ref.dtype)
    else:
        # v5e (no bf16 VPU) and f32 inputs: scale in f32, re-reading the ref.
        o_ref[...] = (x_ref[...].astype(jnp.float32) * inv).astype(o_ref.dtype)


def _rms_norm_folded_kernel(x_ref, bd_ref, o_ref, *, eps, inv_hidden, native_scale):
    """Lane-dense small-hidden path.

    128//hidden logical rows are packed along the 128-lane axis; the per-segment
    (per logical row) sum of squares is a block-diagonal ones matmul on the MXU,
    broadcast back across each segment's lanes, so loads/stores stay full-lane.
    """
    sq = jnp.square(x_ref[...].astype(jnp.float32))
    seg = jnp.dot(sq, bd_ref[...],
                  preferred_element_type=jnp.float32,
                  precision=jax.lax.Precision.HIGHEST)
    inv = jax.lax.rsqrt(seg * inv_hidden + eps)
    if native_scale:
        o_ref[...] = x_ref[...] * inv.astype(o_ref.dtype)
    else:
        o_ref[...] = (x_ref[...].astype(jnp.float32) * inv).astype(o_ref.dtype)


# ---------------------------------------------------------------------------
# Tiling helpers
# ---------------------------------------------------------------------------

def _sublane_multiple(dtype) -> int:
    """Native sublane packing multiple for the dtype (f32:8, bf16:16, int8/fp8:32)."""
    itemsize = jnp.dtype(dtype).itemsize
    if itemsize >= 4:
        return 8
    if itemsize == 2:
        return 16
    return 32


@functools.lru_cache(maxsize=1)
def _chip_config():
    """Returns (vmem_budget, vmem_limit_bytes, min_grid_steps, has_bf16_valu, low_vmem)."""
    vmem_cap = 128 * 1024 * 1024
    try:
        vmem_cap = int(getattr(pltpu.get_tpu_info(), "vmem_capacity_bytes", vmem_cap))
    except Exception:
        pass
    kind = ""
    try:
        kind = jax.devices()[0].device_kind.lower()
    except Exception:
        pass
    # v5e and older have no bf16 VALU/EUP -> keep the full-f32 scale path there.
    has_bf16_valu = not any(t in kind for t in ("v2", "v3", "v4", "v5"))
    low_vmem = vmem_cap <= 96 * 1024 * 1024  # v7x-class: 64 MiB per TensorCore
    if low_vmem:
        # Smaller working set under 64 MiB VMEM (headroom for Mosaic scratch) and
        # >= 2 grid steps per TensorCore (2 TCs) so each core keeps DMA/compute overlap.
        return (20 * 1024 * 1024, 48 * 1024 * 1024, 4, has_bf16_valu, True)
    # v5e / v6e: one TensorCore, 128 MiB physical VMEM -> large blocks, no forced split.
    return (32 * 1024 * 1024, 64 * 1024 * 1024, 1, has_bf16_valu, False)


def _auto_tile_rows(rows, hidden, dtype, *, vmem_budget, min_steps):
    align = _sublane_multiple(dtype)
    itemsize = jnp.dtype(dtype).itemsize
    row_bytes = max(1, hidden * itemsize)
    # Working set per row: double-buffered input + double-buffered output plus
    # roughly one transient f32 row for the squared/upcast intermediates.
    per_row = max(1, hidden * (4 * itemsize + 4))
    tile = max(align, (vmem_budget // per_row) // align * align)
    if min_steps > 1:
        # Keep >= min_steps grid steps (2 per TensorCore on v7x) unless that would
        # push blocks below the ~4 MiB pipelining floor.
        split = -(-rows // min_steps)            # cdiv(rows, min_steps)
        split = -(-split // align) * align       # round up to the sublane multiple
        floor_rows = -(-_MIN_BLOCK_BYTES // row_bytes)
        floor_rows = -(-floor_rows // align) * align
        if split >= floor_rows:
            tile = min(tile, max(split, align))
    return max(align, tile)


def _block_diag_ones(hidden, lanes=_LANES, dtype=jnp.float32):
    """(lanes, lanes) matrix with ones on hidden-sized diagonal blocks."""
    seg = jnp.arange(lanes, dtype=jnp.int32) // hidden
    return (seg[:, None] == seg[None, :]).astype(dtype)


# ---------------------------------------------------------------------------
# pallas_call wrapper
# ---------------------------------------------------------------------------

def _pallas_rms_norm_2d(x2d, eps, tile_rows, cfg, *, native_scale,
                        bd=None, logical_hidden=None):
    rows, width = x2d.shape
    vmem_budget, vmem_limit, min_steps, _, low_vmem = cfg

    align = _sublane_multiple(x2d.dtype)
    if tile_rows is None:
        tr = _auto_tile_rows(rows, width, x2d.dtype,
                             vmem_budget=vmem_budget, min_steps=min_steps)
    else:
        tr = int(tile_rows)
    if tr >= rows:
        tr = rows  # single full-extent block: allowed regardless of alignment
    elif tr % align != 0:
        raise ValueError(
            f"tile_rows={tr} must be a multiple of {align} for dtype {x2d.dtype} "
            f"(or >= the number of rows, {rows})")

    grid = (pl.cdiv(rows, tr),)

    # Input spec; on low-VMEM (v7x-class) chips with unavoidably small blocks,
    # deepen the input pipeline so the DMA queue stays full at 3.2 TB/s.
    x_spec = pl.BlockSpec((tr, width), lambda i: (i, 0))
    block_bytes = tr * width * jnp.dtype(x2d.dtype).itemsize
    if low_vmem and grid[0] > 2 and block_bytes < (2 << 20):
        try:
            x_spec = pl.BlockSpec((tr, width), lambda i: (i, 0),
                                  pipeline_mode=pl.Buffered(3))
        except Exception:
            pass  # fall back to the default 2-deep pipeline

    if bd is None:
        kernel = functools.partial(_rms_norm_kernel, eps=eps,
                                   native_scale=native_scale)
        in_specs = [x_spec]
        operands = (x2d,)
    else:
        kernel = functools.partial(_rms_norm_folded_kernel, eps=eps,
                                   inv_hidden=1.0 / float(logical_hidden),
                                   native_scale=native_scale)
        # Constant index map -> the 64 KiB block-diagonal matrix stays resident.
        in_specs = [x_spec, pl.BlockSpec((_LANES, _LANES), lambda i: (0, 0))]
        operands = (x2d, bd)

    # Ragged last block (rows % tr != 0) is fine: rows are independent, padded-row
    # reads are unused and padded-row writes are discarded.
    return pl.pallas_call(
        kernel,
        out_shape=jax.ShapeDtypeStruct((rows, width), x2d.dtype),
        grid_spec=pltpu.PrefetchScalarGridSpec(
            num_scalar_prefetch=0,
            grid=grid,
            in_specs=in_specs,
            out_specs=pl.BlockSpec((tr, width), lambda i: (i, 0)),
        ),
        compiler_params=pltpu.CompilerParams(
            dimension_semantics=("parallel",),
            vmem_limit_bytes=vmem_limit,
        ),
    )(*operands)


def rms_norm(x, eps: float = 1e-8, tile_rows: int | None = None):
    """RMSNorm over the last axis of x (any leading shape), matching the torch module."""
    orig_shape = x.shape
    hidden = orig_shape[-1]
    x2d = x.reshape(-1, hidden)
    rows = x2d.shape[0]
    if x2d.size == 0:
        return x

    cfg = _chip_config()
    has_bf16_valu = cfg[3]
    native_scale = (jnp.dtype(x.dtype).itemsize == 2) and has_bf16_valu

    # Lane-dense small-hidden path (e.g. hidden=32): fold 128//hidden logical rows
    # into the lane axis so stores are full-lane instead of masked vst.msk.
    fold = _LANES // hidden if (0 < hidden < _LANES and _LANES % hidden == 0) else 1
    if tile_rows is None and fold > 1 and rows % fold == 0 and rows >= fold:
        x_fold = x2d.reshape(rows // fold, _LANES)  # contiguous -> free reshape
        bd = _block_diag_ones(hidden)
        try:
            out = _pallas_rms_norm_2d(x_fold, eps, None, cfg,
                                      native_scale=native_scale,
                                      bd=bd, logical_hidden=hidden)
            return out.reshape(orig_shape)
        except Exception:
            pass  # fall back to the general (lane-masked) path below

    out = _pallas_rms_norm_2d(x2d, eps, tile_rows, cfg, native_scale=native_scale)
    return out.reshape(orig_shape)


class RMSNorm:
    """JAX/Pallas equivalent of the PyTorch RMSNorm module (no learnable params)."""

    def __init__(self, eps: float = 1e-8):
        self.eps = eps

    def __call__(self, x):
        return rms_norm(x, self.eps)


if __name__ == "__main__":
    key = jax.random.PRNGKey(0)
    k0, k1, k2, k3 = jax.random.split(key, 4)

    def ref_rms(x, eps):
        xf = x.astype(jnp.float32)
        return (xf * jax.lax.rsqrt(
            jnp.mean(jnp.square(xf), axis=-1, keepdims=True) + eps)).astype(x.dtype)

    mod = RMSNorm(eps=1e-8)

    # Case 1: shape implied by the module (batch=2, seq=8, hidden=32, f32) —
    # exercises the lane-dense folded path (4 logical rows per 128 lanes).
    x1 = jax.random.normal(k0, (2, 8, 32), dtype=jnp.float32)
    y1 = jax.block_until_ready(mod(x1))
    assert y1.shape == x1.shape and y1.dtype == x1.dtype
    assert jnp.allclose(y1, ref_rms(x1, 1e-8), atol=1e-4, rtol=1e-4)

    # Case 2: general path with a ragged last block (21 rows, tile_rows=8) and a
    # lane-dense hidden=128.
    x2 = jax.random.normal(k1, (3, 7, 128), dtype=jnp.float32)
    y2 = jax.block_until_ready(rms_norm(x2, 1e-8, tile_rows=8))
    assert y2.shape == x2.shape and y2.dtype == x2.dtype
    assert jnp.allclose(y2, ref_rms(x2, 1e-8), atol=1e-5, rtol=1e-5)

    # Case 3: bf16 input (native-dtype scale on bf16-VALU chips, f32 path on v5e).
    x3 = jax.random.normal(k2, (4, 8, 64), dtype=jnp.bfloat16)
    y3 = jax.block_until_ready(rms_norm(x3, 1e-8))
    assert y3.shape == x3.shape and y3.dtype == x3.dtype
    assert jnp.allclose(y3.astype(jnp.float32), ref_rms(x3, 1e-8).astype(jnp.float32),
                        atol=3e-2, rtol=3e-2)

    # Case 4: small-hidden fallback (row count not divisible by the fold factor).
    x4 = jax.random.normal(k3, (3, 32), dtype=jnp.float32)
    y4 = jax.block_until_ready(rms_norm(x4, 1e-8))
    assert y4.shape == x4.shape and y4.dtype == x4.dtype
    assert jnp.allclose(y4, ref_rms(x4, 1e-8), atol=1e-5, rtol=1e-5)

    print("KERNEL_OK")
</pallas_src>

<mosaic_0001>
module attributes {stable_mosaic.version = 11 : i64} {
  func.func @_rms_norm_folded_kernel(%arg0: i32, %arg1: memref<4x128xf32, #tpu.memory_space<vmem>>, %arg2: memref<128x128xf32, #tpu.memory_space<vmem>>, %arg3: memref<4x128xf32, #tpu.memory_space<vmem>>) attributes {dimension_semantics = [#tpu.dimension_semantics<parallel>], iteration_bounds = array<i64: 1>, scalar_prefetch = 0 : i64, scratch_operands = 0 : i64, tpu.core_type = #tpu.core_type<tc>, window_params = [{transform_indices = @transform_0, window_bounds = array<i64: 4, 128>}, {pipeline_mode = #tpu.pipeline_mode<synchronous>, transform_indices = @transform_1, window_bounds = array<i64: 128, 128>}, {transform_indices = @transform_2, window_bounds = array<i64: 4, 128>}]} {
    %c0 = arith.constant 0 : index
    %c0_0 = arith.constant 0 : index
    %0 = vector.load %arg1[%c0, %c0_0] : memref<4x128xf32, #tpu.memory_space<vmem>>, vector<4x128xf32>
    %1 = arith.mulf %0, %0 : vector<4x128xf32>
    %c0_1 = arith.constant 0 : index
    %c0_2 = arith.constant 0 : index
    %2 = vector.load %arg2[%c0_1, %c0_2] : memref<128x128xf32, #tpu.memory_space<vmem>>, vector<128x128xf32>
    %cst = arith.constant dense<0.000000e+00> : vector<4x128xf32>
    %3 = tpu.matmul %1, %2, %cst {dimension_numbers = #tpu.dot_dimension_numbers<[1], [0], [0], [1], [0, 0, 1, 1], [], []>, precision = #tpu.contract_precision<fp32>} : vector<4x128xf32>, vector<128x128xf32>, vector<4x128xf32> -> vector<4x128xf32>
    %cst_3 = arith.constant 3.125000e-02 : f32
    %4 = vector.broadcast %cst_3 : f32 to vector<4x128xf32>
    %5 = arith.mulf %3, %4 : vector<4x128xf32>
    %cst_4 = arith.constant 9.99999993E-9 : f32
    %6 = vector.broadcast %cst_4 : f32 to vector<4x128xf32>
    %7 = arith.addf %5, %6 : vector<4x128xf32>
    %8 = math.rsqrt %7 : vector<4x128xf32>
    %c0_5 = arith.constant 0 : index
    %c0_6 = arith.constant 0 : index
    %9 = vector.load %arg1[%c0_5, %c0_6] : memref<4x128xf32, #tpu.memory_space<vmem>>, vector<4x128xf32>
    %10 = arith.mulf %9, %8 : vector<4x128xf32>
    %c0_7 = arith.constant 0 : index
    %c0_8 = arith.constant 0 : index
    %11 = vector.load %arg3[%c0_7, %c0_8] : memref<4x128xf32, #tpu.memory_space<vmem>>, vector<4x128xf32>
    tpu.vector_store %arg3[%c0_7, %c0_8], %10 {strides = array<i32>} : memref<4x128xf32, #tpu.memory_space<vmem>>, vector<4x128xf32>,
    return
  }
  func.func @transform_0(%arg0: i32) -> (i32, i32) {
    %c0_i32 = arith.constant 0 : i32
    %c0_i32_0 = arith.constant 0 : i32
    return %arg0, %c0_i32 : i32, i32
  }
  func.func @transform_1(%arg0: i32) -> (i32, i32) {
    %c0_i32 = arith.constant 0 : i32
    %c0_i32_0 = arith.constant 0 : i32
    %c0_i32_1 = arith.constant 0 : i32
    return %c0_i32, %c0_i32_0 : i32, i32
  }
  func.func @transform_2(%arg0: i32) -> (i32, i32) {
    %c0_i32 = arith.constant 0 : i32
    %c0_i32_0 = arith.constant 0 : i32
    return %arg0, %c0_i32 : i32, i32
  }
}

module attributes {stable_mosaic.version = 11 : i64} {
  func.func @_rms_norm_kernel(%arg0: i32, %arg1: memref<16x32xf32, #tpu.memory_space<vmem>>, %arg2: memref<16x32xf32, #tpu.memory_space<vmem>>) attributes {dimension_semantics = [#tpu.dimension_semantics<parallel>], iteration_bounds = array<i64: 1>, scalar_prefetch = 0 : i64, scratch_operands = 0 : i64, tpu.core_type = #tpu.core_type<tc>, window_params = [{transform_indices = @transform_0, window_bounds = array<i64: 16, 32>}, {transform_indices = @transform_1, window_bounds = array<i64: 16, 32>}]} {
    %c0 = arith.constant 0 : index
    %c0_0 = arith.constant 0 : index
    %0 = vector.load %arg1[%c0, %c0_0] : memref<16x32xf32, #tpu.memory_space<vmem>>, vector<16x32xf32>
    %1 = arith.mulf %0, %0 : vector<16x32xf32>
    %cst = arith.constant dense<0.000000e+00> : vector<16xf32>
    %2 = vector.multi_reduction <add>, %1, %cst [1] : vector<16x32xf32> to vector<16xf32>
    %3 = vector.shape_cast %2 : vector<16xf32> to vector<16x1xf32>
    %cst_1 = arith.constant 3.200000e+01 : f32
    %4 = vector.broadcast %cst_1 : f32 to vector<16x1xf32>
    %5 = arith.divf %3, %4 : vector<16x1xf32>
    %cst_2 = arith.constant 9.99999993E-9 : f32
    %6 = vector.broadcast %cst_2 : f32 to vector<16x1xf32>
    %7 = arith.addf %5, %6 : vector<16x1xf32>
    %8 = math.rsqrt %7 : vector<16x1xf32>
    %c0_3 = arith.constant 0 : index
    %c0_4 = arith.constant 0 : index
    %9 = vector.load %arg1[%c0_3, %c0_4] : memref<16x32xf32, #tpu.memory_space<vmem>>, vector<16x32xf32>
    %10 = vector.broadcast %8 : vector<16x1xf32> to vector<16x32xf32>
    %11 = arith.mulf %9, %10 : vector<16x32xf32>
    %c0_5 = arith.constant 0 : index
    %c0_6 = arith.constant 0 : index
    %12 = vector.load %arg2[%c0_5, %c0_6] : memref<16x32xf32, #tpu.memory_space<vmem>>, vector<16x32xf32>
    tpu.vector_store %arg2[%c0_5, %c0_6], %11 {strides = array<i32>} : memref<16x32xf32, #tpu.memory_space<vmem>>, vector<16x32xf32>,
    return
  }
  func.func @transform_0(%arg0: i32) -> (i32, i32) {
    %c0_i32 = arith.constant 0 : i32
    %c0_i32_0 = arith.constant 0 : i32
    return %arg0, %c0_i32 : i32, i32
  }
  func.func @transform_1(%arg0: i32) -> (i32, i32) {
    %c0_i32 = arith.constant 0 : i32
    %c0_i32_0 = arith.constant 0 : i32
    return %arg0, %c0_i32 : i32, i32
  }
}

</mosaic_0001>

<llo_original>
// kernel: tpu_custom_call.1
$region0: #{tpu_custom_call.1}
  #allocation0 [shape = 'u32[]', space=smem, size = 0x4, offset = 0x4, fixed_abs, tag = 'smem constant byte address 0x4 - core index']
  #allocation1 [shape = 'u32[144,128]{1,0:T(1,128)}', space=vmem, size = 0x12000, scoped, tag = 'internal scratch']
  %s0 = inlined_call_operand.hbm [shape: f32[4,128], index: 0, kind: input, shape index: {}]
  %s1 = inlined_call_operand.hbm [shape: f32[128,128], index: 1, kind: input, shape index: {}]
  %s2 = inlined_call_operand.hbm [shape: f32[4,128], index: 2, kind: output, shape index: {}]
  %s3 = sld [smem:[#allocation0]]
  $region26: #{tpu_custom_call.1} parent=0
    _
  %s5 = ssub.s32 1, %s3
  %s6 = scalar_select 0, %s5, %s3
  $region1: #{tpu_custom_call.1} parent=0
    #allocation2 [shape = 'u8[2048]{0}', space=vmem, size = 0x800, scoped, tag = 'input window, operand 0, single buffered']
    #allocation3 [shape = 's32[1]{0}', space=sflag, size = 0x4, scoped, tag = 'scoped memory for tpu_custom_call.1']
    #allocation4 [shape = 's32[1]{0}', space=sflag, size = 0x4, scoped, tag = 'scoped memory for tpu_custom_call.1']
    #allocation5 [shape = 'u8[65536]{0}', space=vmem, size = 0x10000, scoped, tag = 'input window, operand 1, single buffered']
    #allocation6 [shape = 's32[1]{0}', space=sflag, size = 0x4, scoped, tag = 'scoped memory for tpu_custom_call.1']
    #allocation7 [shape = 'u8[2048]{0}', space=vmem, size = 0x800, scoped, tag = 'output window, operand 0, single buffered']
    %7 = vsyncpa [#allocation3], 0
    %8 = vsyncpa [#allocation6], 0
    %9 = vsyncpa [#allocation4], 0
    // Predicated region
    $region2: #{tpu_custom_call.1} parent=1 // pred_check
      _
    $region3: #{tpu_custom_call.1} parent=1 // pred_check_branch
      %11 = sbr.rel (0) target = $region5
    $region4: #{tpu_custom_call.1} parent=1 // pred_region
      %s13 = ssub.s32 64, 64
      %14 = vsyncadd [#allocation3], %s13
      %s16 = sshll.u32 [#allocation2], 4
      %s17 = int_to_ptr.vmem [resolvable:$true] %s16
      %19 = dma.hbm_to_vmem [thread:$0]  %s0, 64, %s17, [#allocation3]
    $region5: #{tpu_custom_call.1} parent=1 // pred_fallthru
      _
    // Predicated region
    $region6: #{tpu_custom_call.1} parent=1 // pred_check
      _
    $region7: #{tpu_custom_call.1} parent=1 // pred_check_branch
      %21 = sbr.rel (0) target = $region9
    $region8: #{tpu_custom_call.1} parent=1 // pred_region
      %s23 = ssub.s32 2048, 2048
      %24 = vsyncadd [#allocation6], %s23
      %s25 = sshll.u32 [#allocation5], 4
      %s26 = int_to_ptr.vmem [resolvable:$true] %s25
      %31 = dma.hbm_to_vmem [thread:$0]  %s1, 2048, %s26, [#allocation6], 128, 128, 8
    $region9: #{tpu_custom_call.1} parent=1 // pred_fallthru
      _
    // Predicated region
    $region10: #{tpu_custom_call.1} parent=1 // pred_check
      _
    $region11: #{tpu_custom_call.1} parent=1 // pred_check_branch
      %33 = sbr.rel (0) target = $region13
    $region12: #{tpu_custom_call.1} parent=1 // pred_region
      %34 = dma.done [#allocation3], 64
    $region13: #{tpu_custom_call.1} parent=1 // pred_fallthru
      _
    // Predicated region
    $region14: #{tpu_custom_call.1} parent=1 // pred_check
      _
    $region15: #{tpu_custom_call.1} parent=1 // pred_check_branch
      %36 = sbr.rel (0) target = $region17
    $region16: #{tpu_custom_call.1} parent=1 // pred_region
      %37 = dma.done [#allocation6], 2048
    $region17: #{tpu_custom_call.1} parent=1 // pred_fallthru
      _
    %v38 = vld [vmem:[#allocation2] sm:$0xf]
    %v39 = vmul.f32 %v38, %v38
    %v40 = vld [vmem:[#allocation5] sm:$0xff]
    %v41 = vld [vmem:[#allocation5 + $0x8] sm:$0xff]
    %v42 = vld [vmem:[#allocation5 + $0x10] sm:$0xff]
    %v43 = vld [vmem:[#allocation5 + $0x18] sm:$0xff]
    %v44 = vld [vmem:[#allocation5 + $0x20] sm:$0xff]
    %v45 = vld [vmem:[#allocation5 + $0x28] sm:$0xff]
    %v46 = vld [vmem:[#allocation5 + $0x30] sm:$0xff]
    %v47 = vld [vmem:[#allocation5 + $0x38] sm:$0xff]
    %v48 = vld [vmem:[#allocation5 + $0x40] sm:$0xff]
    %v49 = vld [vmem:[#allocation5 + $0x48] sm:$0xff]
    %v50 = vld [vmem:[#allocation5 + $0x50] sm:$0xff]
    %v51 = vld [vmem:[#allocation5 + $0x58] sm:$0xff]
    %v52 = vld [vmem:[#allocation5 + $0x60] sm:$0xff]
    %v53 = vld [vmem:[#allocation5 + $0x68] sm:$0xff]
    %v54 = vld [vmem:[#allocation5 + $0x70] sm:$0xff]
    %v55 = vld [vmem:[#allocation5 + $0x78] sm:$0xff]
    %56 = vmatprep.subr.mxu0 0.0
    %v57 = vand.u32 %v40, 4294901760
    %58 = vmatpush1.msra.mxu0 %v57
    %59 = vmatprep.subr.mxu0 0.0
    %v60 = vand.u32 %v41, 4294901760
    %61 = vmatpush1.msra.mxu0 %v60
    %62 = vmatprep.subr.mxu0 0.0
    %v63 = vand.u32 %v42, 4294901760
    %64 = vmatpush1.msra.mxu0 %v63
    %65 = vmatprep.subr.mxu0 0.0
    %v66 = vand.u32 %v43, 4294901760
    %67 = vmatpush1.msra.mxu0 %v66
    %68 = vmatprep.subr.mxu0 0.0
    %v69 = vand.u32 %v44, 4294901760
    %70 = vmatpush1.msra.mxu0 %v69
    %71 = vmatprep.subr.mxu0 0.0
    %v72 = vand.u32 %v45, 4294901760
    %73 = vmatpush1.msra.mxu0 %v72
    %74 = vmatprep.subr.mxu0 0.0
    %v75 = vand.u32 %v46, 4294901760
    %76 = vmatpush1.msra.mxu0 %v75
    %77 = vmatprep.subr.mxu0 0.0
    %v78 = vand.u32 %v47, 4294901760
    %79 = vmatpush1.msra.mxu0 %v78
    %80 = vmatprep.subr.mxu0 0.0
    %v81 = vand.u32 %v48, 4294901760
    %82 = vmatpush1.msra.mxu0 %v81
    %83 = vmatprep.subr.mxu0 0.0
    %v84 = vand.u32 %v49, 4294901760
    %85 = vmatpush1.msra.mxu0 %v84
    %86 = vmatprep.subr.mxu0 0.0
    %v87 = vand.u32 %v50, 4294901760
    %88 = vmatpush1.msra.mxu0 %v87
    %89 = vmatprep.subr.mxu0 0.0
    %v90 = vand.u32 %v51, 4294901760
    %91 = vmatpush1.msra.mxu0 %v90
    %92 = vmatprep.subr.mxu0 0.0
    %v93 = vand.u32 %v52, 4294901760
    %94 = vmatpush1.msra.mxu0 %v93
    %95 = vmatprep.subr.mxu0 0.0
    %v96 = vand.u32 %v53, 4294901760
    %97 = vmatpush1.msra.mxu0 %v96
    %98 = vmatprep.subr.mxu0 0.0
    %v99 = vand.u32 %v54, 4294901760
    %100 = vmatpush1.msra.mxu0 %v99
    %101 = vmatprep.subr.mxu0 0.0
    %v102 = vand.u32 %v55, 4294901760
    %103 = vmatpush1.msra.mxu0 %v102
    %104 = vmatprep.subr.mxu0 0.0
    %105 = vmatpush1.msra.mxu0 0.0
    %106 = vmatprep.subr.mxu0 0.0
    %107 = vmatpush1.msra.mxu0 0.0
    %108 = vmatprep.subr.mxu0 0.0
    %109 = vmatpush1.msra.mxu0 0.0
    %110 = vmatprep.subr.mxu0 0.0
    %111 = vmatpush1.msra.mxu0 0.0
    %112 = vmatprep.subr.mxu0 0.0
    %113 = vmatpush1.msra.mxu0 0.0
    %114 = vmatprep.subr.mxu0 0.0
    %115 = vmatpush1.msra.mxu0 0.0
    %116 = vmatprep.subr.mxu0 0.0
    %117 = vmatpush1.msra.mxu0 0.0
    %118 = vmatprep.subr.mxu0 0.0
    %119 = vmatpush1.msra.mxu0 0.0
    %120 = vmatprep.subr.mxu0 0.0
    %121 = vmatpush1.msra.mxu0 0.0
    %122 = vmatprep.subr.mxu0 0.0
    %123 = vmatpush1.msra.mxu0 0.0
    %124 = vmatprep.subr.mxu0 0.0
    %125 = vmatpush1.msra.mxu0 0.0
    %126 = vmatprep.subr.mxu0 0.0
    %127 = vmatpush1.msra.mxu0 0.0
    %128 = vmatprep.subr.mxu0 0.0
    %129 = vmatpush1.msra.mxu0 0.0
    %130 = vmatprep.subr.mxu0 0.0
    %131 = vmatpush1.msra.mxu0 0.0
    %132 = vmatprep.subr.mxu0 0.0
    %133 = vmatpush1.msra.mxu0 0.0
    %134 = vmatprep.subr.mxu0 0.0
    %135 = vmatpush1.msra.mxu0 0.0
    %136 = vmatprep.mubr.f32.mxu0 0.0
    %v137 = vand.u32 %v39, 4294901760
    %v138 = vsub.f32 %v39, %v137
    %v139 = vand.u32 %v138, 4294901760
    %v140 = vsub.f32 %v138, %v139
    %v141 = vand.u32 %v140, 4294901760
    %142 = vmatmul.mubr.f32.gmra.mrb[0].mxu0 %v141
    %v143 = vpop.f32.mrb[0].mxu0
    %v144 = vadd.f32 0.0, %v143
    %v145 = vpop.f32.mrb[0].mxu0
    %146 = vdwg.mxu0
    %147 = vmatprep.subr.mxu0 0.0
    %v148 = vand.u32 %v40, 4294901760
    %v149 = vsub.f32 %v40, %v148
    %v150 = vand.u32 %v149, 4294901760
    %v151 = vsub.f32 %v149, %v150
    %v152 = vand.u32 %v151, 4294901760
    %153 = vmatpush1.msra.mxu0 %v152
    %154 = vmatprep.subr.mxu0 0.0
    %v155 = vand.u32 %v41, 4294901760
    %v156 = vsub.f32 %v41, %v155
    %v157 = vand.u32 %v156, 4294901760
    %v158 = vsub.f32 %v156, %v157
    %v159 = vand.u32 %v158, 4294901760
    %160 = vmatpush1.msra.mxu0 %v159
    %161 = vmatprep.subr.mxu0 0.0
    %v162 = vand.u32 %v42, 4294901760
    %v163 = vsub.f32 %v42, %v162
    %v164 = vand.u32 %v163, 4294901760
    %v165 = vsub.f32 %v163, %v164
    %v166 = vand.u32 %v165, 4294901760
    %167 = vmatpush1.msra.mxu0 %v166
    %168 = vmatprep.subr.mxu0 0.0
    %v169 = vand.u32 %v43, 4294901760
    %v170 = vsub.f32 %v43, %v169
    %v171 = vand.u32 %v170, 4294901760
    %v172 = vsub.f32 %v170, %v171
    %v173 = vand.u32 %v172, 4294901760
    %174 = vmatpush1.msra.mxu0 %v173
    %175 = vmatprep.subr.mxu0 0.0
    %v176 = vand.u32 %v44, 4294901760
    %v177 = vsub.f32 %v44, %v176
    %v178 = vand.u32 %v177, 4294901760
    %v179 = vsub.f32 %v177, %v178
    %v180 = vand.u32 %v179, 4294901760
    %181 = vmatpush1.msra.mxu0 %v180
    %182 = vmatprep.subr.mxu0 0.0
    %v183 = vand.u32 %v45, 4294901760
    %v184 = vsub.f32 %v45, %v183
    %v185 = vand.u32 %v184, 4294901760
    %v186 = vsub.f32 %v184, %v185
    %v187 = vand.u32 %v186, 4294901760
    %188 = vmatpush1.msra.mxu0 %v187
    %189 = vmatprep.subr.mxu0 0.0
    %v190 = vand.u32 %v46, 4294901760
    %v191 = vsub.f32 %v46, %v190
    %v192 = vand.u32 %v191, 4294901760
    %v193 = vsub.f32 %v191, %v192
    %v194 = vand.u32 %v193, 4294901760
    %195 = vmatpush1.msra.mxu0 %v194
    %196 = vmatprep.subr.mxu0 0.0
    %v197 = vand.u32 %v47, 4294901760
    %v198 = vsub.f32 %v47, %v197
    %v199 = vand.u32 %v198, 4294901760
    %v200 = vsub.f32 %v198, %v199
    %v201 = vand.u32 %v200, 4294901760
    %202 = vmatpush1.msra.mxu0 %v201
    %203 = vmatprep.subr.mxu0 0.0
    %v204 = vand.u32 %v48, 4294901760
    %v205 = vsub.f32 %v48, %v204
    %v206 = vand.u32 %v205, 4294901760
    %v207 = vsub.f32 %v205, %v206
    %v208 = vand.u32 %v207, 4294901760
    %209 = vmatpush1.msra.mxu0 %v208
    %210 = vmatprep.subr.mxu0 0.0
    %v211 = vand.u32 %v49, 4294901760
    %v212 = vsub.f32 %v49, %v211
    %v213 = vand.u32 %v212, 4294901760
    %v214 = vsub.f32 %v212, %v213
    %v215 = vand.u32 %v214, 4294901760
    %216 = vmatpush1.msra.mxu0 %v215
    %217 = vmatprep.subr.mxu0 0.0
    %v218 = vand.u32 %v50, 4294901760
    %v219 = vsub.f32 %v50, %v218
    %v220 = vand.u32 %v219, 4294901760
    %v221 = vsub.f32 %v219, %v220
    %v222 = vand.u32 %v221, 4294901760
    %223 = vmatpush1.msra.mxu0 %v222
    %224 = vmatprep.subr.mxu0 0.0
    %v225 = vand.u32 %v51, 4294901760
    %v226 = vsub.f32 %v51, %v225
    %v227 = vand.u32 %v226, 4294901760
    %v228 = vsub.f32 %v226, %v227
    %v229 = vand.u32 %v228, 4294901760
    %230 = vmatpush1.msra.mxu0 %v229
    %231 = vmatprep.subr.mxu0 0.0
    %v232 = vand.u32 %v52, 4294901760
    %v233 = vsub.f32 %v52, %v232
    %v234 = vand.u32 %v233, 4294901760
    %v235 = vsub.f32 %v233, %v234
    %v236 = vand.u32 %v235, 4294901760
    %237 = vmatpush1.msra.mxu0 %v236
    %238 = vmatprep.subr.mxu0 0.0
    %v239 = vand.u32 %v53, 4294901760
    %v240 = vsub.f32 %v53, %v239
    %v241 = vand.u32 %v240, 4294901760
    %v242 = vsub.f32 %v240, %v241
    %v243 = vand.u32 %v242, 4294901760
    %244 = vmatpush1.msra.mxu0 %v243
    %245 = vmatprep.subr.mxu0 0.0
    %v246 = vand.u32 %v54, 4294901760
    %v247 = vsub.f32 %v54, %v246
    %v248 = vand.u32 %v247, 4294901760
    %v249 = vsub.f32 %v247, %v248
    %v250 = vand.u32 %v249, 4294901760
    %251 = vmatpush1.msra.mxu0 %v250
    %252 = vmatprep.subr.mxu0 0.0
    %v253 = vand.u32 %v55, 4294901760
    %v254 = vsub.f32 %v55, %v253
    %v255 = vand.u32 %v254, 4294901760
    %v256 = vsub.f32 %v254, %v255
    %v257 = vand.u32 %v256, 4294901760
    %258 = vmatpush1.msra.mxu0 %v257
    %259 = vmatprep.subr.mxu0 0.0
    %260 = vmatpush1.msra.mxu0 0.0
    %261 = vmatprep.subr.mxu0 0.0
    %262 = vmatpush1.msra.mxu0 0.0
    %263 = vmatprep.subr.mxu0 0.0
    %264 = vmatpush1.msra.mxu0 0.0
    %265 = vmatprep.subr.mxu0 0.0
    %266 = vmatpush1.msra.mxu0 0.0
    %267 = vmatprep.subr.mxu0 0.0
    %268 = vmatpush1.msra.mxu0 0.0
    %269 = vmatprep.subr.mxu0 0.0
    %270 = vmatpush1.msra.mxu0 0.0
    %271 = vmatprep.subr.mxu0 0.0
    %272 = vmatpush1.msra.mxu0 0.0
    %273 = vmatprep.subr.mxu0 0.0
    %274 = vmatpush1.msra.mxu0 0.0
    %275 = vmatprep.subr.mxu0 0.0
    %276 = vmatpush1.msra.mxu0 0.0
    %277 = vmatprep.subr.mxu0 0.0
    %278 = vmatpush1.msra.mxu0 0.0
    %279 = vmatprep.subr.mxu0 0.0
    %280 = vmatpush1.msra.mxu0 0.0
    %281 = vmatprep.subr.mxu0 0.0
    %282 = vmatpush1.msra.mxu0 0.0
    %283 = vmatprep.subr.mxu0 0.0
    %284 = vmatpush1.msra.mxu0 0.0
    %285 = vmatprep.subr.mxu0 0.0
    %286 = vmatpush1.msra.mxu0 0.0
    %287 = vmatprep.subr.mxu0 0.0
    %288 = vmatpush1.msra.mxu0 0.0
    %289 = vmatprep.subr.mxu0 0.0
    %290 = vmatpush1.msra.mxu0 0.0
    %291 = vmatprep.mubr.f32.mxu0 0.0
    %v292 = vand.u32 %v39, 4294901760
    %293 = vmatmul.mubr.f32.gmra.mrb[0].mxu0 %v292
    %v294 = vpop.f32.mrb[0].mxu0
    %v295 = vadd.f32 %v144, %v294
    %v296 = vpop.f32.mrb[0].mxu0
    %297 = vdwg.mxu0
    %298 = vmatprep.subr.mxu0 0.0
    %v299 = vand.u32 %v40, 4294901760
    %v300 = vsub.f32 %v40, %v299
    %301 = vmatpush1.msra.mxu0 %v300
    %302 = vmatprep.subr.mxu0 0.0
    %v303 = vand.u32 %v41, 4294901760
    %v304 = vsub.f32 %v41, %v303
    %305 = vmatpush1.msra.mxu0 %v304
    %306 = vmatprep.subr.mxu0 0.0
    %v307 = vand.u32 %v42, 4294901760
    %v308 = vsub.f32 %v42, %v307
    %309 = vmatpush1.msra.mxu0 %v308
    %310 = vmatprep.subr.mxu0 0.0
    %v311 = vand.u32 %v43, 4294901760
    %v312 = vsub.f32 %v43, %v311
    %313 = vmatpush1.msra.mxu0 %v312
    %314 = vmatprep.subr.mxu0 0.0
    %v315 = vand.u32 %v44, 4294901760
    %v316 = vsub.f32 %v44, %v315
    %317 = vmatpush1.msra.mxu0 %v316
    %318 = vmatprep.subr.mxu0 0.0
    %v319 = vand.u32 %v45, 4294901760
    %v320 = vsub.f32 %v45, %v319
    %321 = vmatpush1.msra.mxu0 %v320
    %322 = vmatprep.subr.mxu0 0.0
    %v323 = vand.u32 %v46, 4294901760
    %v324 = vsub.f32 %v46, %v323
    %325 = vmatpush1.msra.mxu0 %v324
    %326 = vmatprep.subr.mxu0 0.0
    %v327 = vand.u32 %v47, 4294901760
    %v328 = vsub.f32 %v47, %v327
    %329 = vmatpush1.msra.mxu0 %v328
    %330 = vmatprep.subr.mxu0 0.0
    %v331 = vand.u32 %v48, 4294901760
    %v332 = vsub.f32 %v48, %v331
    %333 = vmatpush1.msra.mxu0 %v332
    %334 = vmatprep.subr.mxu0 0.0
    %v335 = vand.u32 %v49, 4294901760
    %v336 = vsub.f32 %v49, %v335
    %337 = vmatpush1.msra.mxu0 %v336
    %338 = vmatprep.subr.mxu0 0.0
    %v339 = vand.u32 %v50, 4294901760
    %v340 = vsub.f32 %v50, %v339
    %341 = vmatpush1.msra.mxu0 %v340
    %342 = vmatprep.subr.mxu0 0.0
    %v343 = vand.u32 %v51, 4294901760
    %v344 = vsub.f32 %v51, %v343
    %345 = vmatpush1.msra.mxu0 %v344
    %346 = vmatprep.subr.mxu0 0.0
    %v347 = vand.u32 %v52, 4294901760
    %v348 = vsub.f32 %v52, %v347
    %349 = vmatpush1.msra.mxu0 %v348
    %350 = vmatprep.subr.mxu0 0.0
    %v351 = vand.u32 %v53, 4294901760
    %v352 = vsub.f32 %v53, %v351
    %353 = vmatpush1.msra.mxu0 %v352
    %354 = vmatprep.subr.mxu0 0.0
    %v355 = vand.u32 %v54, 4294901760
    %v356 = vsub.f32 %v54, %v355
    %357 = vmatpush1.msra.mxu0 %v356
    %358 = vmatprep.subr.mxu0 0.0
    %v359 = vand.u32 %v55, 4294901760
    %v360 = vsub.f32 %v55, %v359
    %361 = vmatpush1.msra.mxu0 %v360
    %362 = vmatprep.subr.mxu0 0.0
    %363 = vmatpush1.msra.mxu0 0.0
    %364 = vmatprep.subr.mxu0 0.0
    %365 = vmatpush1.msra.mxu0 0.0
    %366 = vmatprep.subr.mxu0 0.0
    %367 = vmatpush1.msra.mxu0 0.0
    %368 = vmatprep.subr.mxu0 0.0
    %369 = vmatpush1.msra.mxu0 0.0
    %370 = vmatprep.subr.mxu0 0.0
    %371 = vmatpush1.msra.mxu0 0.0
    %372 = vmatprep.subr.mxu0 0.0
    %373 = vmatpush1.msra.mxu0 0.0
    %374 = vmatprep.subr.mxu0 0.0
    %375 = vmatpush1.msra.mxu0 0.0
    %376 = vmatprep.subr.mxu0 0.0
    %377 = vmatpush1.msra.mxu0 0.0
    %378 = vmatprep.subr.mxu0 0.0
    %379 = vmatpush1.msra.mxu0 0.0
    %380 = vmatprep.subr.mxu0 0.0
    %381 = vmatpush1.msra.mxu0 0.0
    %382 = vmatprep.subr.mxu0 0.0
    %383 = vmatpush1.msra.mxu0 0.0
    %384 = vmatprep.subr.mxu0 0.0
    %385 = vmatpush1.msra.mxu0 0.0
    %386 = vmatprep.subr.mxu0 0.0
    %387 = vmatpush1.msra.mxu0 0.0
    %388 = vmatprep.subr.mxu0 0.0
    %389 = vmatpush1.msra.mxu0 0.0
    %390 = vmatprep.subr.mxu0 0.0
    %391 = vmatpush1.msra.mxu0 0.0
    %392 = vmatprep.subr.mxu0 0.0
    %393 = vmatpush1.msra.mxu0 0.0
    %394 = vmatprep.mubr.f32.mxu0 0.0
    %v395 = vand.u32 %v39, 4294901760
    %v396 = vsub.f32 %v39, %v395
    %397 = vmatmul.mubr.f32.gmra.mrb[0].mxu0 %v396
    %v398 = vpop.f32.mrb[0].mxu0
    %v399 = vadd.f32 %v295, %v398
    %v400 = vpop.f32.mrb[0].mxu0
    %401 = vdwg.mxu0
    %402 = vmatprep.subr.mxu0 0.0
    %v403 = vand.u32 %v40, 4294901760
    %404 = vmatpush1.msra.mxu0 %v403
    %405 = vmatprep.subr.mxu0 0.0
    %v406 = vand.u32 %v41, 4294901760
    %407 = vmatpush1.msra.mxu0 %v406
    %408 = vmatprep.subr.mxu0 0.0
    %v409 = vand.u32 %v42, 4294901760
    %410 = vmatpush1.msra.mxu0 %v409
    %411 = vmatprep.subr.mxu0 0.0
    %v412 = vand.u32 %v43, 4294901760
    %413 = vmatpush1.msra.mxu0 %v412
    %414 = vmatprep.subr.mxu0 0.0
    %v415 = vand.u32 %v44, 4294901760
    %416 = vmatpush1.msra.mxu0 %v415
    %417 = vmatprep.subr.mxu0 0.0
    %v418 = vand.u32 %v45, 4294901760
    %419 = vmatpush1.msra.mxu0 %v418
    %420 = vmatprep.subr.mxu0 0.0
    %v421 = vand.u32 %v46, 4294901760
    %422 = vmatpush1.msra.mxu0 %v421
    %423 = vmatprep.subr.mxu0 0.0
    %v424 = vand.u32 %v47, 4294901760
    %425 = vmatpush1.msra.mxu0 %v424
    %426 = vmatprep.subr.mxu0 0.0
    %v427 = vand.u32 %v48, 4294901760
    %428 = vmatpush1.msra.mxu0 %v427
    %429 = vmatprep.subr.mxu0 0.0
    %v430 = vand.u32 %v49, 4294901760
    %431 = vmatpush1.msra.mxu0 %v430
    %432 = vmatprep.subr.mxu0 0.0
    %v433 = vand.u32 %v50, 4294901760
    %434 = vmatpush1.msra.mxu0 %v433
    %435 = vmatprep.subr.mxu0 0.0
    %v436 = vand.u32 %v51, 4294901760
    %437 = vmatpush1.msra.mxu0 %v436
    %438 = vmatprep.subr.mxu0 0.0
    %v439 = vand.u32 %v52, 4294901760
    %440 = vmatpush1.msra.mxu0 %v439
    %441 = vmatprep.subr.mxu0 0.0
    %v442 = vand.u32 %v53, 4294901760
    %443 = vmatpush1.msra.mxu0 %v442
    %444 = vmatprep.subr.mxu0 0.0
    %v445 = vand.u32 %v54, 4294901760
    %446 = vmatpush1.msra.mxu0 %v445
    %447 = vmatprep.subr.mxu0 0.0
    %v448 = vand.u32 %v55, 4294901760
    %449 = vmatpush1.msra.mxu0 %v448
    %450 = vmatprep.subr.mxu0 0.0
    %451 = vmatpush1.msra.mxu0 0.0
    %452 = vmatprep.subr.mxu0 0.0
    %453 = vmatpush1.msra.mxu0 0.0
    %454 = vmatprep.subr.mxu0 0.0
    %455 = vmatpush1.msra.mxu0 0.0
    %456 = vmatprep.subr.mxu0 0.0
    %457 = vmatpush1.msra.mxu0 0.0
    %458 = vmatprep.subr.mxu0 0.0
    %459 = vmatpush1.msra.mxu0 0.0
    %460 = vmatprep.subr.mxu0 0.0
    %461 = vmatpush1.msra.mxu0 0.0
    %462 = vmatprep.subr.mxu0 0.0
    %463 = vmatpush1.msra.mxu0 0.0
    %464 = vmatprep.subr.mxu0 0.0
    %465 = vmatpush1.msra.mxu0 0.0
    %466 = vmatprep.subr.mxu0 0.0
    %467 = vmatpush1.msra.mxu0 0.0
    %468 = vmatprep.subr.mxu0 0.0
    %469 = vmatpush1.msra.mxu0 0.0
    %470 = vmatprep.subr.mxu0 0.0
    %471 = vmatpush1.msra.mxu0 0.0
    %472 = vmatprep.subr.mxu0 0.0
    %473 = vmatpush1.msra.mxu0 0.0
    %474 = vmatprep.subr.mxu0 0.0
    %475 = vmatpush1.msra.mxu0 0.0
    %476 = vmatprep.subr.mxu0 0.0
    %477 = vmatpush1.msra.mxu0 0.0
    %478 = vmatprep.subr.mxu0 0.0
    %479 = vmatpush1.msra.mxu0 0.0
    %480 = vmatprep.subr.mxu0 0.0
    %481 = vmatpush1.msra.mxu0 0.0
    %482 = vmatprep.mubr.f32.mxu0 0.0
    %v483 = vand.u32 %v39, 4294901760
    %v484 = vsub.f32 %v39, %v483
    %v485 = vand.u32 %v484, 4294901760
    %486 = vmatmul.mubr.f32.gmra.mrb[0].mxu0 %v485
    %v487 = vpop.f32.mrb[0].mxu0
    %v488 = vadd.f32 %v399, %v487
    %v489 = vpop.f32.mrb[0].mxu0
    %490 = vdwg.mxu0
    %491 = vmatprep.subr.mxu0 0.0
    %v492 = vand.u32 %v40, 4294901760
    %v493 = vsub.f32 %v40, %v492
    %v494 = vand.u32 %v493, 4294901760
    %495 = vmatpush1.msra.mxu0 %v494
    %496 = vmatprep.subr.mxu0 0.0
    %v497 = vand.u32 %v41, 4294901760
    %v498 = vsub.f32 %v41, %v497
    %v499 = vand.u32 %v498, 4294901760
    %500 = vmatpush1.msra.mxu0 %v499
    %501 = vmatprep.subr.mxu0 0.0
    %v502 = vand.u32 %v42, 4294901760
    %v503 = vsub.f32 %v42, %v502
    %v504 = vand.u32 %v503, 4294901760
    %505 = vmatpush1.msra.mxu0 %v504
    %506 = vmatprep.subr.mxu0 0.0
    %v507 = vand.u32 %v43, 4294901760
    %v508 = vsub.f32 %v43, %v507
    %v509 = vand.u32 %v508, 4294901760
    %510 = vmatpush1.msra.mxu0 %v509
    %511 = vmatprep.subr.mxu0 0.0
    %v512 = vand.u32 %v44, 4294901760
    %v513 = vsub.f32 %v44, %v512
    %v514 = vand.u32 %v513, 4294901760
    %515 = vmatpush1.msra.mxu0 %v514
    %516 = vmatprep.subr.mxu0 0.0
    %v517 = vand.u32 %v45, 4294901760
    %v518 = vsub.f32 %v45, %v517
    %v519 = vand.u32 %v518, 4294901760
    %520 = vmatpush1.msra.mxu0 %v519
    %521 = vmatprep.subr.mxu0 0.0
    %v522 = vand.u32 %v46, 4294901760
    %v523 = vsub.f32 %v46, %v522
    %v524 = vand.u32 %v523, 4294901760
    %525 = vmatpush1.msra.mxu0 %v524
    %526 = vmatprep.subr.mxu0 0.0
    %v527 = vand.u32 %v47, 4294901760
    %v528 = vsub.f32 %v47, %v527
    %v529 = vand.u32 %v528, 4294901760
    %530 = vmatpush1.msra.mxu0 %v529
    %531 = vmatprep.subr.mxu0 0.0
    %v532 = vand.u32 %v48, 4294901760
    %v533 = vsub.f32 %v48, %v532
    %v534 = vand.u32 %v533, 4294901760
    %535 = vmatpush1.msra.mxu0 %v534
    %536 = vmatprep.subr.mxu0 0.0
    %v537 = vand.u32 %v49, 4294901760
    %v538 = vsub.f32 %v49, %v537
    %v539 = vand.u32 %v538, 4294901760
    %540 = vmatpush1.msra.mxu0 %v539
    %541 = vmatprep.subr.mxu0 0.0
    %v542 = vand.u32 %v50, 4294901760
    %v543 = vsub.f32 %v50, %v542
    %v544 = vand.u32 %v543, 4294901760
    %545 = vmatpush1.msra.mxu0 %v544
    %546 = vmatprep.subr.mxu0 0.0
    %v547 = vand.u32 %v51, 4294901760
    %v548 = vsub.f32 %v51, %v547
    %v549 = vand.u32 %v548, 4294901760
    %550 = vmatpush1.msra.mxu0 %v549
    %551 = vmatprep.subr.mxu0 0.0
    %v552 = vand.u32 %v52, 4294901760
    %v553 = vsub.f32 %v52, %v552
    %v554 = vand.u32 %v553, 4294901760
    %555 = vmatpush1.msra.mxu0 %v554
    %556 = vmatprep.subr.mxu0 0.0
    %v557 = vand.u32 %v53, 4294901760
    %v558 = vsub.f32 %v53, %v557
    %v559 = vand.u32 %v558, 4294901760
    %560 = vmatpush1.msra.mxu0 %v559
    %561 = vmatprep.subr.mxu0 0.0
    %v562 = vand.u32 %v54, 4294901760
    %v563 = vsub.f32 %v54, %v562
    %v564 = vand.u32 %v563, 4294901760
    %565 = vmatpush1.msra.mxu0 %v564
    %566 = vmatprep.subr.mxu0 0.0
    %v567 = vand.u32 %v55, 4294901760
    %v568 = vsub.f32 %v55, %v567
    %v569 = vand.u32 %v568, 4294901760
    %570 = vmatpush1.msra.mxu0 %v569
    %571 = vmatprep.subr.mxu0 0.0
    %572 = vmatpush1.msra.mxu0 0.0
    %573 = vmatprep.subr.mxu0 0.0
    %574 = vmatpush1.msra.mxu0 0.0
    %575 = vmatprep.subr.mxu0 0.0
    %576 = vmatpush1.msra.mxu0 0.0
    %577 = vmatprep.subr.mxu0 0.0
    %578 = vmatpush1.msra.mxu0 0.0
    %579 = vmatprep.subr.mxu0 0.0
    %580 = vmatpush1.msra.mxu0 0.0
    %581 = vmatprep.subr.mxu0 0.0
    %582 = vmatpush1.msra.mxu0 0.0
    %583 = vmatprep.subr.mxu0 0.0
    %584 = vmatpush1.msra.mxu0 0.0
    %585 = vmatprep.subr.mxu0 0.0
    %586 = vmatpush1.msra.mxu0 0.0
    %587 = vmatprep.subr.mxu0 0.0
    %588 = vmatpush1.msra.mxu0 0.0
    %589 = vmatprep.subr.mxu0 0.0
    %590 = vmatpush1.msra.mxu0 0.0
    %591 = vmatprep.subr.mxu0 0.0
    %592 = vmatpush1.msra.mxu0 0.0
    %593 = vmatprep.subr.mxu0 0.0
    %594 = vmatpush1.msra.mxu0 0.0
    %595 = vmatprep.subr.mxu0 0.0
    %596 = vmatpush1.msra.mxu0 0.0
    %597 = vmatprep.subr.mxu0 0.0
    %598 = vmatpush1.msra.mxu0 0.0
    %599 = vmatprep.subr.mxu0 0.0
    %600 = vmatpush1.msra.mxu0 0.0
    %601 = vmatprep.subr.mxu0 0.0
    %602 = vmatpush1.msra.mxu0 0.0
    %603 = vmatprep.mubr.f32.mxu0 0.0
    %v604 = vand.u32 %v39, 4294901760
    %605 = vmatmul.mubr.f32.gmra.mrb[0].mxu0 %v604
    %v606 = vpop.f32.mrb[0].mxu0
    %v607 = vadd.f32 %v488, %v606
    %v608 = vpop.f32.mrb[0].mxu0
    %609 = vdwg.mxu0
    %610 = vmatprep.subr.mxu0 0.0
    %v611 = vand.u32 %v40, 4294901760
    %612 = vmatpush1.msra.mxu0 %v611
    %613 = vmatprep.subr.mxu0 0.0
    %v614 = vand.u32 %v41, 4294901760
    %615 = vmatpush1.msra.mxu0 %v614
    %616 = vmatprep.subr.mxu0 0.0
    %v617 = vand.u32 %v42, 4294901760
    %618 = vmatpush1.msra.mxu0 %v617
    %619 = vmatprep.subr.mxu0 0.0
    %v620 = vand.u32 %v43, 4294901760
    %621 = vmatpush1.msra.mxu0 %v620
    %622 = vmatprep.subr.mxu0 0.0
    %v623 = vand.u32 %v44, 4294901760
    %624 = vmatpush1.msra.mxu0 %v623
    %625 = vmatprep.subr.mxu0 0.0
    %v626 = vand.u32 %v45, 4294901760
    %627 = vmatpush1.msra.mxu0 %v626
    %628 = vmatprep.subr.mxu0 0.0
    %v629 = vand.u32 %v46, 4294901760
    %630 = vmatpush1.msra.mxu0 %v629
    %631 = vmatprep.subr.mxu0 0.0
    %v632 = vand.u32 %v47, 4294901760
    %633 = vmatpush1.msra.mxu0 %v632
    %634 = vmatprep.subr.mxu0 0.0
    %v635 = vand.u32 %v48, 4294901760
    %636 = vmatpush1.msra.mxu0 %v635
    %637 = vmatprep.subr.mxu0 0.0
    %v638 = vand.u32 %v49, 4294901760
    %639 = vmatpush1.msra.mxu0 %v638
    %640 = vmatprep.subr.mxu0 0.0
    %v641 = vand.u32 %v50, 4294901760
    %642 = vmatpush1.msra.mxu0 %v641
    %643 = vmatprep.subr.mxu0 0.0
    %v644 = vand.u32 %v51, 4294901760
    %645 = vmatpush1.msra.mxu0 %v644
    %646 = vmatprep.subr.mxu0 0.0
    %v647 = vand.u32 %v52, 4294901760
    %648 = vmatpush1.msra.mxu0 %v647
    %649 = vmatprep.subr.mxu0 0.0
    %v650 = vand.u32 %v53, 4294901760
    %651 = vmatpush1.msra.mxu0 %v650
    %652 = vmatprep.subr.mxu0 0.0
    %v653 = vand.u32 %v54, 4294901760
    %654 = vmatpush1.msra.mxu0 %v653
    %655 = vmatprep.subr.mxu0 0.0
    %v656 = vand.u32 %v55, 4294901760
    %657 = vmatpush1.msra.mxu0 %v656
    %658 = vmatprep.subr.mxu0 0.0
    %659 = vmatpush1.msra.mxu0 0.0
    %660 = vmatprep.subr.mxu0 0.0
    %661 = vmatpush1.msra.mxu0 0.0
    %662 = vmatprep.subr.mxu0 0.0
    %663 = vmatpush1.msra.mxu0 0.0
    %664 = vmatprep.subr.mxu0 0.0
    %665 = vmatpush1.msra.mxu0 0.0
    %666 = vmatprep.subr.mxu0 0.0
    %667 = vmatpush1.msra.mxu0 0.0
    %668 = vmatprep.subr.mxu0 0.0
    %669 = vmatpush1.msra.mxu0 0.0
    %670 = vmatprep.subr.mxu0 0.0
    %671 = vmatpush1.msra.mxu0 0.0
    %672 = vmatprep.subr.mxu0 0.0
    %673 = vmatpush1.msra.mxu0 0.0
    %674 = vmatprep.subr.mxu0 0.0
    %675 = vmatpush1.msra.mxu0 0.0
    %676 = vmatprep.subr.mxu0 0.0
    %677 = vmatpush1.msra.mxu0 0.0
    %678 = vmatprep.subr.mxu0 0.0
    %679 = vmatpush1.msra.mxu0 0.0
    %680 = vmatprep.subr.mxu0 0.0
    %681 = vmatpush1.msra.mxu0 0.0
    %682 = vmatprep.subr.mxu0 0.0
    %683 = vmatpush1.msra.mxu0 0.0
    %684 = vmatprep.subr.mxu0 0.0
    %685 = vmatpush1.msra.mxu0 0.0
    %686 = vmatprep.subr.mxu0 0.0
    %687 = vmatpush1.msra.mxu0 0.0
    %688 = vmatprep.subr.mxu0 0.0
    %689 = vmatpush1.msra.mxu0 0.0
    %690 = vmatprep.mubr.f32.mxu0 0.0
    %v691 = vand.u32 %v39, 4294901760
    %692 = vmatmul.mubr.f32.gmra.mrb[0].mxu0 %v691
    %v693 = vpop.f32.mrb[0].mxu0
    %v694 = vadd.f32 %v607, %v693
    %v695 = vpop.f32.mrb[0].mxu0
    %696 = vdwg.mxu0
    %v697 = vmul.f32 %v694, 0.03125
    %v698 = vadd.f32 %v697, 1e-08
    %v699 = vrsqrt.pop %v698
    %v700 = vmul.f32 %v38, %v699
    %701 = vst [vmem:[#allocation7] sm:$0xf] %v700
    // Predicated region
    $region18: #{tpu_custom_call.1} parent=1 // pred_check
      _
    $region19: #{tpu_custom_call.1} parent=1 // pred_check_branch
      %703 = sbr.rel (0) target = $region21
    $region20: #{tpu_custom_call.1} parent=1 // pred_region
      %s705 = ssub.s32 64, 64
      %706 = vsyncadd [#allocation4], %s705
      %s708 = sshll.u32 [#allocation7], 4
      %s709 = int_to_ptr.vmem [resolvable:$true] %s708
      %711 = dma.vmem_to_hbm [thread:$0]  %s709, 64, %s2, [#allocation4]
    $region21: #{tpu_custom_call.1} parent=1 // pred_fallthru
      _
    // Predicated region
    $region22: #{tpu_custom_call.1} parent=1 // pred_check
      _
    $region23: #{tpu_custom_call.1} parent=1 // pred_check_branch
      %713 = sbr.rel (0) target = $region25
    $region24: #{tpu_custom_call.1} parent=1 // pred_region
      %714 = dma.done [#allocation4], 64
    $region25: #{tpu_custom_call.1} parent=1 // pred_fallthru
      _
    %715 = vsyncpa [#allocation3], 1
    %716 = vsyncpa [#allocation6], 1
    %717 = vsyncpa [#allocation4], 1

// kernel: tpu_custom_call.1
$region0: #{tpu_custom_call.1}
  #allocation0 [shape = 'u32[]', space=smem, size = 0x4, offset = 0x4, fixed_abs, tag = 'smem constant byte address 0x4 - core index']
  #allocation1 [shape = 'u32[144,128]{1,0:T(1,128)}', space=vmem, size = 0x12000, scoped, tag = 'internal scratch']
  %s0 = inlined_call_operand.hbm [shape: f32[16,32], index: 0, kind: input, shape index: {}]
  %s1 = inlined_call_operand.hbm [shape: f32[16,32], index: 1, kind: output, shape index: {}]
  %s2 = sld [smem:[#allocation0]]
  $region18: #{tpu_custom_call.1} parent=0
    _
  %s4 = ssub.s32 1, %s2
  %s5 = scalar_select 0, %s4, %s2
  $region1: #{tpu_custom_call.1} parent=0
    #allocation2 [shape = 'u8[8192]{0}', space=vmem, size = 0x2000, scoped, tag = 'input window, operand 0, single buffered']
    #allocation3 [shape = 's32[1]{0}', space=sflag, size = 0x4, scoped, tag = 'scoped memory for tpu_custom_call.1']
    #allocation4 [shape = 's32[1]{0}', space=sflag, size = 0x4, scoped, tag = 'scoped memory for tpu_custom_call.1']
    #allocation5 [shape = 'u8[8192]{0}', space=vmem, size = 0x2000, scoped, tag = 'output window, operand 0, single buffered']
    %6 = vsyncpa [#allocation3], 0
    %7 = vsyncpa [#allocation4], 0
    // Predicated region
    $region2: #{tpu_custom_call.1} parent=1 // pred_check
      _
    $region3: #{tpu_custom_call.1} parent=1 // pred_check_branch
      %9 = sbr.rel (0) target = $region5
    $region4: #{tpu_custom_call.1} parent=1 // pred_region
      %s11 = ssub.s32 256, 256
      %12 = vsyncadd [#allocation3], %s11
      %s13 = sshll.u32 [#allocation2], 4
      %s14 = int_to_ptr.vmem [resolvable:$true] %s13
      %19 = dma.hbm_to_vmem [thread:$0]  %s0, 256, %s14, [#allocation3], 128, 128, 8
    $region5: #{tpu_custom_call.1} parent=1 // pred_fallthru
      _
    // Predicated region
    $region6: #{tpu_custom_call.1} parent=1 // pred_check
      _
    $region7: #{tpu_custom_call.1} parent=1 // pred_check_branch
      %21 = sbr.rel (0) target = $region9
    $region8: #{tpu_custom_call.1} parent=1 // pred_region
      %22 = dma.done [#allocation3], 256
    $region9: #{tpu_custom_call.1} parent=1 // pred_fallthru
      _
    %v23 = vld [vmem:[#allocation2] sm:$0xff]
    %v24 = vld [vmem:[#allocation2 + $0x8] sm:$0xff]
    %v25 = vmul.f32 %v23, %v23
    %v26 = vmul.f32 %v24, %v24
    %vm27 = vcmask 261120
    %v28 = vsel %vm27, %v25, 0.0
    %29 = vadd.xlane.f32.xlu0 %v28
    %v30 = vpop.xlane.xlu0 %29
    %v31 = vsel %vm27, %v26, 0.0
    %32 = vadd.xlane.f32.xlu0 %v31
    %v33 = vpop.xlane.xlu0 %32
    %v34 = vrcp.pop 32.0
    %v35 = vmul.f32 %v30, %v34
    %v36 = vmul.f32 %v33, %v34
    %v37 = vadd.f32 %v35, 1e-08
    %v38 = vadd.f32 %v36, 1e-08
    %v39 = vrsqrt.pop %v37
    %v40 = vrsqrt.pop %v38
    %v41 = vmul.f32 %v23, %v39
    %v42 = vmul.f32 %v24, %v40
    %43 = vst.msk [vmem:[#allocation5] sm:$0xff] %vm27, %v41
    %44 = vst.msk [vmem:[#allocation5 + $0x8] sm:$0xff] %vm27, %v42
    // Predicated region
    $region10: #{tpu_custom_call.1} parent=1 // pred_check
      _
    $region11: #{tpu_custom_call.1} parent=1 // pred_check_branch
      %46 = sbr.rel (0) target = $region13
    $region12: #{tpu_custom_call.1} parent=1 // pred_region
      %s48 = ssub.s32 256, 256
      %49 = vsyncadd [#allocation4], %s48
      %s50 = sshll.u32 [#allocation5], 4
      %s51 = int_to_ptr.vmem [resolvable:$true] %s50
      %56 = dma.vmem_to_hbm [thread:$0]  %s51, 256, %s1, [#allocation4], 128, 128, 8
    $region13: #{tpu_custom_call.1} parent=1 // pred_fallthru
      _
    // Predicated region
    $region14: #{tpu_custom_call.1} parent=1 // pred_check
      _
    $region15: #{tpu_custom_call.1} parent=1 // pred_check_branch
      %58 = sbr.rel (0) target = $region17
    $region16: #{tpu_custom_call.1} parent=1 // pred_region
      %59 = dma.done [#allocation4], 256
    $region17: #{tpu_custom_call.1} parent=1 // pred_fallthru
      _
    %60 = vsyncpa [#allocation3], 1
    %61 = vsyncpa [#allocation4], 1

</llo_original>
